<compile_context>
chip_gen: v6e
topology: v6e:2x2x1
jax: 0.10.0
libtpu: 0.0.40
codegen_flags: <defaults>
</compile_context>

<pallas_src>
import jax
import jax.numpy as jnp
from jax.experimental import pallas as pl
from jax.experimental.pallas import tpu as pltpu

EPS = 1e-5
HIDDEN = 256


def generator_kernel(x_ref, w1_ref, w2_ref, vec_ref, w3_ref, b3_ref,
                     out_ref, h3_ref):
    # ---- Layers 1/2 + BatchNorm + ReLU: run once, result kept in VMEM ----
    @pl.when(pl.program_id(0) == 0)
    def _():
        b1 = vec_ref[0:1, :]
        b2 = vec_ref[1:2, :]
        gamma = vec_ref[2:3, :]
        beta = vec_ref[3:4, :]

        # Linear 1 + ReLU (bf16 MXU inputs, f32 accumulation)
        x = x_ref[...].astype(jnp.bfloat16)
        h1 = jnp.dot(x, w1_ref[...], preferred_element_type=jnp.float32) + b1
        h1 = jnp.maximum(h1, 0.0)

        # Linear 2
        h2 = jnp.dot(h1.astype(jnp.bfloat16), w2_ref[...],
                     preferred_element_type=jnp.float32) + b2

        # BatchNorm1d (training mode: batch stats, biased variance), folded
        # into a single scale/shift FMA.  All math in f32.
        mean = jnp.mean(h2, axis=0, keepdims=True)              # (1, 256)
        msq = jnp.mean(h2 * h2, axis=0, keepdims=True)          # (1, 256)
        var = jnp.maximum(msq - mean * mean, 0.0)               # biased var
        scale = gamma * jax.lax.rsqrt(var + EPS)
        shift = beta - mean * scale

        # ReLU, stash for both output-lane blocks.
        h3_ref[...] = jnp.maximum(h2 * scale + shift, 0.0)

    # ---- Linear 3 block (lane-dense 512-wide slab) + Tanh ----
    y = jnp.dot(h3_ref[...].astype(jnp.bfloat16), w3_ref[...],
                preferred_element_type=jnp.float32) + b3_ref[...]
    out_ref[...] = jnp.tanh(y).astype(out_ref.dtype)


def generator_forward(x, params, image_size):
    """x: (B, latent)  ->  (B, 1, 28, 28) float32."""
    w1, w2, vec, w3p, b3p = params
    B = x.shape[0]
    padded = w3p.shape[1]          # image_size rounded up to n_blocks*128*k
    n_blocks = 2
    bn = padded // n_blocks        # 512 lanes per block (multiple of 128)

    # Inputs that stay resident across the whole grid: constant block index,
    # so Pallas DMAs them exactly once.
    resident = lambda a: pl.BlockSpec(a.shape, lambda j: (0,) * a.ndim)

    y2d = pl.pallas_call(
        generator_kernel,
        out_shape=jax.ShapeDtypeStruct((B, padded), jnp.float32),
        grid=(n_blocks,),
        in_specs=[
            resident(x),                                    # (B, latent)
            resident(w1),                                   # (latent, 256)
            resident(w2),                                   # (256, 256)
            resident(vec),                                  # (4, 256) packed
            pl.BlockSpec((HIDDEN, bn), lambda j: (0, j)),   # w3 lane block
            pl.BlockSpec((1, bn), lambda j: (0, j)),        # b3 lane block
        ],
        out_specs=pl.BlockSpec((B, bn), lambda j: (0, j)),
        scratch_shapes=[pltpu.VMEM((B, HIDDEN), jnp.float32)],
        compiler_params=pltpu.CompilerParams(
            dimension_semantics=("arbitrary",),   # step 1 reuses h3 scratch
            vmem_limit_bytes=8 << 20),
    )(x, w1, w2, vec, w3p, b3p)

    # Drop the zero-padded lanes, then NCHW reshape matching torch's
    # y.view(B, 1, 28, 28).
    return y2d[:, :image_size].reshape(B, 1, 28, 28)


def init_params(key, latent_size, image_size, n_blocks=2):
    """Deterministic synthetic parameters (shapes match nn.Module __init__).

    * w1/w2/w3 stored as bf16 (kernel is weight-DMA dominated); all bias /
      BN params stay f32.
    * b1, b2, gamma, beta packed into a single (4, 256) f32 array.
    * w3/b3 zero-padded along the output dim to a multiple of n_blocks*128
      so the kernel's output stores are lane-dense and the lane axis splits
      into equal 128-aligned blocks.
    """
    ks = jax.random.split(key, 6)
    align = n_blocks * 128
    padded = ((image_size + align - 1) // align) * align

    w1 = (jax.random.normal(ks[0], (latent_size, HIDDEN), jnp.float32) * 0.05
          ).astype(jnp.bfloat16)
    b1 = jax.random.normal(ks[1], (1, HIDDEN), jnp.float32) * 0.01
    w2 = (jax.random.normal(ks[2], (HIDDEN, HIDDEN), jnp.float32) * 0.05
          ).astype(jnp.bfloat16)
    b2 = jax.random.normal(ks[3], (1, HIDDEN), jnp.float32) * 0.01
    gamma = jnp.ones((1, HIDDEN), jnp.float32)
    beta = jnp.zeros((1, HIDDEN), jnp.float32)

    # Pack the four (1, 256) vectors into one (4, 256) f32 input.
    vec = jnp.concatenate([b1, b2, gamma, beta], axis=0)

    w3 = jax.random.normal(ks[4], (HIDDEN, image_size), jnp.float32) * 0.05
    b3 = jax.random.normal(ks[5], (1, image_size), jnp.float32) * 0.01
    # Zero-pad the output dimension (zeros so no garbage leaks through tanh
    # into the sliced image).
    w3p = jnp.zeros((HIDDEN, padded), jnp.float32).at[:, :image_size].set(w3)
    w3p = w3p.astype(jnp.bfloat16)
    b3p = jnp.zeros((1, padded), jnp.float32).at[:, :image_size].set(b3)

    return (w1, w2, vec, w3p, b3p)


if __name__ == "__main__":
    latent_size = 64
    image_size = 28 * 28  # forward reshapes to (B, 1, 28, 28) => must be 784
    B = 8

    key = jax.random.PRNGKey(0)
    k_x, k_p = jax.random.split(key)
    x = jax.random.normal(k_x, (B, latent_size), jnp.float32)
    params = init_params(k_p, latent_size, image_size)

    y = generator_forward(x, params, image_size)
    y = jax.block_until_ready(y)

    assert y.shape == (B, 1, 28, 28), y.shape
    assert y.dtype == jnp.float32
    # Tanh output range sanity check
    assert bool(jnp.all(jnp.abs(y) <= 1.0 + 1e-6))

    print("KERNEL_OK")
</pallas_src>

<mosaic_0001>
module attributes {stable_mosaic.version = 11 : i64} {
  func.func @generator_kernel(%arg0: i32, %arg1: memref<8x64xf32, #tpu.memory_space<vmem>>, %arg2: memref<64x256xbf16, #tpu.memory_space<vmem>>, %arg3: memref<256x256xbf16, #tpu.memory_space<vmem>>, %arg4: memref<4x256xf32, #tpu.memory_space<vmem>>, %arg5: memref<256x512xbf16, #tpu.memory_space<vmem>>, %arg6: memref<1x512xf32, #tpu.memory_space<vmem>>, %arg7: memref<8x512xf32, #tpu.memory_space<vmem>>, %arg8: memref<8x256xf32, #tpu.memory_space<vmem>>) attributes {dimension_semantics = [#tpu.dimension_semantics<arbitrary>], iteration_bounds = array<i64: 2>, scalar_prefetch = 0 : i64, scratch_operands = 1 : i64, tpu.core_type = #tpu.core_type<tc>, window_params = [{pipeline_mode = #tpu.pipeline_mode<synchronous>, transform_indices = @transform_0, window_bounds = array<i64: 8, 64>}, {pipeline_mode = #tpu.pipeline_mode<synchronous>, transform_indices = @transform_1, window_bounds = array<i64: 64, 256>}, {pipeline_mode = #tpu.pipeline_mode<synchronous>, transform_indices = @transform_2, window_bounds = array<i64: 256, 256>}, {pipeline_mode = #tpu.pipeline_mode<synchronous>, transform_indices = @transform_3, window_bounds = array<i64: 4, 256>}, {transform_indices = @transform_4, window_bounds = array<i64: 256, 512>}, {transform_indices = @transform_5, window_bounds = array<i64: 1, 512>}, {transform_indices = @transform_6, window_bounds = array<i64: 8, 512>}]} {
    %c0_i32 = arith.constant 0 : i32
    %0 = arith.cmpi eq, %arg0, %c0_i32 : i32
    %1 = arith.extui %0 : i1 to i32
    %c0_i32_0 = arith.constant 0 : i32
    %2 = arith.cmpi ne, %1, %c0_i32_0 : i32
    scf.if %2 {
      %c0_8 = arith.constant 0 : index
      %c0_9 = arith.constant 0 : index
      %12 = vector.load %arg4[%c0_8, %c0_9] : memref<4x256xf32, #tpu.memory_space<vmem>>, vector<1x256xf32>
      %c1 = arith.constant 1 : index
      %c0_10 = arith.constant 0 : index
      %13 = vector.load %arg4[%c1, %c0_10] : memref<4x256xf32, #tpu.memory_space<vmem>>, vector<1x256xf32>
      %c2 = arith.constant 2 : index
      %c0_11 = arith.constant 0 : index
      %14 = vector.load %arg4[%c2, %c0_11] : memref<4x256xf32, #tpu.memory_space<vmem>>, vector<1x256xf32>
      %c3 = arith.constant 3 : index
      %c0_12 = arith.constant 0 : index
      %15 = vector.load %arg4[%c3, %c0_12] : memref<4x256xf32, #tpu.memory_space<vmem>>, vector<1x256xf32>
      %c0_13 = arith.constant 0 : index
      %c0_14 = arith.constant 0 : index
      %16 = vector.load %arg1[%c0_13, %c0_14] : memref<8x64xf32, #tpu.memory_space<vmem>>, vector<8x64xf32>
      %17 = arith.truncf %16 : vector<8x64xf32> to vector<8x64xbf16>
      %c0_15 = arith.constant 0 : index
      %c0_16 = arith.constant 0 : index
      %18 = vector.load %arg2[%c0_15, %c0_16] : memref<64x256xbf16, #tpu.memory_space<vmem>>, vector<64x256xbf16>
      %cst_17 = arith.constant dense<0.000000e+00> : vector<8x256xf32>
      %19 = tpu.matmul %17, %18, %cst_17 {dimension_numbers = #tpu.dot_dimension_numbers<[1], [0], [0], [1], [0, 0, 1, 1], [], []>} : vector<8x64xbf16>, vector<64x256xbf16>, vector<8x256xf32> -> vector<8x256xf32>
      %20 = vector.broadcast %12 : vector<1x256xf32> to vector<8x256xf32>
      %21 = arith.addf %19, %20 : vector<8x256xf32>
      %cst_18 = arith.constant 0.000000e+00 : f32
      %22 = vector.broadcast %cst_18 : f32 to vector<8x256xf32>
      %23 = arith.maximumf %21, %22 : vector<8x256xf32>
      %24 = arith.truncf %23 : vector<8x256xf32> to vector<8x256xbf16>
      %c0_19 = arith.constant 0 : index
      %c0_20 = arith.constant 0 : index
      %25 = vector.load %arg3[%c0_19, %c0_20] : memref<256x256xbf16, #tpu.memory_space<vmem>>, vector<256x256xbf16>
      %cst_21 = arith.constant dense<0.000000e+00> : vector<8x256xf32>
      %26 = tpu.matmul %24, %25, %cst_21 {dimension_numbers = #tpu.dot_dimension_numbers<[1], [0], [0], [1], [0, 0, 1, 1], [], []>} : vector<8x256xbf16>, vector<256x256xbf16>, vector<8x256xf32> -> vector<8x256xf32>
      %27 = vector.broadcast %13 : vector<1x256xf32> to vector<8x256xf32>
      %28 = arith.addf %26, %27 : vector<8x256xf32>
      %cst_22 = arith.constant dense<0.000000e+00> : vector<256xf32>
      %29 = vector.multi_reduction <add>, %28, %cst_22 [0] : vector<8x256xf32> to vector<256xf32>
      %30 = vector.shape_cast %29 : vector<256xf32> to vector<1x256xf32>
      %cst_23 = arith.constant 8.000000e+00 : f32
      %31 = vector.broadcast %cst_23 : f32 to vector<1x256xf32>
      %32 = arith.divf %30, %31 : vector<1x256xf32>
      %33 = arith.mulf %28, %28 : vector<8x256xf32>
      %cst_24 = arith.constant dense<0.000000e+00> : vector<256xf32>
      %34 = vector.multi_reduction <add>, %33, %cst_24 [0] : vector<8x256xf32> to vector<256xf32>
      %35 = vector.shape_cast %34 : vector<256xf32> to vector<1x256xf32>
      %cst_25 = arith.constant 8.000000e+00 : f32
      %36 = vector.broadcast %cst_25 : f32 to vector<1x256xf32>
      %37 = arith.divf %35, %36 : vector<1x256xf32>
      %38 = arith.mulf %32, %32 : vector<1x256xf32>
      %39 = arith.subf %37, %38 : vector<1x256xf32>
      %cst_26 = arith.constant 0.000000e+00 : f32
      %40 = vector.broadcast %cst_26 : f32 to vector<1x256xf32>
      %41 = arith.maximumf %39, %40 : vector<1x256xf32>
      %cst_27 = arith.constant 9.99999974E-6 : f32
      %42 = vector.broadcast %cst_27 : f32 to vector<1x256xf32>
      %43 = arith.addf %41, %42 : vector<1x256xf32>
      %44 = math.rsqrt %43 : vector<1x256xf32>
      %45 = arith.mulf %14, %44 : vector<1x256xf32>
      %46 = arith.mulf %32, %45 : vector<1x256xf32>
      %47 = arith.subf %15, %46 : vector<1x256xf32>
      %48 = vector.broadcast %45 : vector<1x256xf32> to vector<8x256xf32>
      %49 = arith.mulf %28, %48 : vector<8x256xf32>
      %50 = vector.broadcast %47 : vector<1x256xf32> to vector<8x256xf32>
      %51 = arith.addf %49, %50 : vector<8x256xf32>
      %cst_28 = arith.constant 0.000000e+00 : f32
      %52 = vector.broadcast %cst_28 : f32 to vector<8x256xf32>
      %53 = arith.maximumf %51, %52 : vector<8x256xf32>
      %c0_29 = arith.constant 0 : index
      %c0_30 = arith.constant 0 : index
      %54 = vector.load %arg8[%c0_29, %c0_30] : memref<8x256xf32, #tpu.memory_space<vmem>>, vector<8x256xf32>
      tpu.vector_store %arg8[%c0_29, %c0_30], %53 {strides = array<i32>} : memref<8x256xf32, #tpu.memory_space<vmem>>, vector<8x256xf32>,
    } else {
    }
    %c0 = arith.constant 0 : index
    %c0_1 = arith.constant 0 : index
    %3 = vector.load %arg8[%c0, %c0_1] : memref<8x256xf32, #tpu.memory_space<vmem>>, vector<8x256xf32>
    %4 = arith.truncf %3 : vector<8x256xf32> to vector<8x256xbf16>
    %c0_2 = arith.constant 0 : index
    %c0_3 = arith.constant 0 : index
    %5 = vector.load %arg5[%c0_2, %c0_3] : memref<256x512xbf16, #tpu.memory_space<vmem>>, vector<256x512xbf16>
    %cst = arith.constant dense<0.000000e+00> : vector<8x512xf32>
    %6 = tpu.matmul %4, %5, %cst {dimension_numbers = #tpu.dot_dimension_numbers<[1], [0], [0], [1], [0, 0, 1, 1], [], []>} : vector<8x256xbf16>, vector<256x512xbf16>, vector<8x512xf32> -> vector<8x512xf32>
    %c0_4 = arith.constant 0 : index
    %c0_5 = arith.constant 0 : index
    %7 = vector.load %arg6[%c0_4, %c0_5] : memref<1x512xf32, #tpu.memory_space<vmem>>, vector<1x512xf32>
    %8 = vector.broadcast %7 : vector<1x512xf32> to vector<8x512xf32>
    %9 = arith.addf %6, %8 : vector<8x512xf32>
    %10 = math.tanh %9 : vector<8x512xf32>
    %c0_6 = arith.constant 0 : index
    %c0_7 = arith.constant 0 : index
    %11 = vector.load %arg7[%c0_6, %c0_7] : memref<8x512xf32, #tpu.memory_space<vmem>>, vector<8x512xf32>
    tpu.vector_store %arg7[%c0_6, %c0_7], %10 {strides = array<i32>} : memref<8x512xf32, #tpu.memory_space<vmem>>, vector<8x512xf32>,
    return
  }
  func.func @transform_0(%arg0: i32) -> (i32, i32) {
    %c0_i32 = arith.constant 0 : i32
    %c0_i32_0 = arith.constant 0 : i32
    %c0_i32_1 = arith.constant 0 : i32
    return %c0_i32, %c0_i32_0 : i32, i32
  }
  func.func @transform_1(%arg0: i32) -> (i32, i32) {
    %c0_i32 = arith.constant 0 : i32
    %c0_i32_0 = arith.constant 0 : i32
    %c0_i32_1 = arith.constant 0 : i32
    return %c0_i32, %c0_i32_0 : i32, i32
  }
  func.func @transform_2(%arg0: i32) -> (i32, i32) {
    %c0_i32 = arith.constant 0 : i32
    %c0_i32_0 = arith.constant 0 : i32
    %c0_i32_1 = arith.constant 0 : i32
    return %c0_i32, %c0_i32_0 : i32, i32
  }
  func.func @transform_3(%arg0: i32) -> (i32, i32) {
    %c0_i32 = arith.constant 0 : i32
    %c0_i32_0 = arith.constant 0 : i32
    %c0_i32_1 = arith.constant 0 : i32
    return %c0_i32, %c0_i32_0 : i32, i32
  }
  func.func @transform_4(%arg0: i32) -> (i32, i32) {
    %c0_i32 = arith.constant 0 : i32
    %c0_i32_0 = arith.constant 0 : i32
    return %c0_i32, %arg0 : i32, i32
  }
  func.func @transform_5(%arg0: i32) -> (i32, i32) {
    %c0_i32 = arith.constant 0 : i32
    %c0_i32_0 = arith.constant 0 : i32
    return %c0_i32, %arg0 : i32, i32
  }
  func.func @transform_6(%arg0: i32) -> (i32, i32) {
    %c0_i32 = arith.constant 0 : i32
    %c0_i32_0 = arith.constant 0 : i32
    return %c0_i32, %arg0 : i32, i32
  }
}

</mosaic_0001>

<llo_original>
// kernel: tpu_custom_call.1
$region0: #{tpu_custom_call.1}
  #allocation0 [shape = 'u32[]', space=smem, size = 0x4, offset = 0x4, fixed_abs, tag = 'smem constant byte address 0x4 - core index']
  #allocation1 [shape = 'u32[144,128]{1,0:T(1,128)}', space=vmem, size = 0x12000, scoped, tag = 'internal scratch']
  #allocation2 [shape = 'f32[8,256]{1,0:T(8,128)}', space=vmem, size = 0x2000, scoped, tag = 'scratch operand']
  %s0 = inlined_call_operand.hbm [shape: f32[8,64], index: 0, kind: input, shape index: {}]
  %s1 = inlined_call_operand.hbm [shape: bf16[64,256], index: 1, kind: input, shape index: {}]
  %s2 = inlined_call_operand.hbm [shape: bf16[256,256], index: 2, kind: input, shape index: {}]
  %s3 = inlined_call_operand.hbm [shape: f32[4,256], index: 3, kind: input, shape index: {}]
  %s4 = inlined_call_operand.hbm [shape: bf16[256,1024], index: 4, kind: input, shape index: {}]
  %s5 = inlined_call_operand.vmem [shape: f32[1,1024], index: 5, kind: input, shape index: {}]
  %s6 = inlined_call_operand.hbm [shape: f32[8,1024], index: 6, kind: output, shape index: {}]
  %s7 = sld [smem:[#allocation0]]
  $region81: #{tpu_custom_call.1} parent=0
    _
  %s9 = ssub.s32 1, %s7
  %s10 = scalar_select 0, %s9, %s7
  $region1: #{tpu_custom_call.1} parent=0
    #allocation3 [shape = 'u8[4096]{0}', space=vmem, size = 0x1000, scoped, tag = 'input window, operand 0, single buffered']
    #allocation4 [shape = 's32[2]{0}', space=sflag, size = 0x8, scoped, tag = 'scoped memory for tpu_custom_call.1']
    #allocation5 [shape = 's32[2]{0}', space=sflag, size = 0x8, scoped, tag = 'scoped memory for tpu_custom_call.1']
    #allocation6 [shape = 'u8[32768]{0}', space=vmem, size = 0x8000, scoped, tag = 'input window, operand 1, single buffered']
    #allocation7 [shape = 's32[1]{0}', space=sflag, size = 0x4, scoped, tag = 'scoped memory for tpu_custom_call.1']
    #allocation8 [shape = 'u8[131072]{0}', space=vmem, size = 0x20000, scoped, tag = 'input window, operand 2, single buffered']
    #allocation9 [shape = 'u8[4096]{0}', space=vmem, size = 0x1000, scoped, tag = 'input window, operand 3, single buffered']
    #allocation10 [shape = 's32[1]{0}', space=sflag, size = 0x4, scoped, tag = 'scoped memory for tpu_custom_call.1']
    #allocation11 [shape = 'u8[524288]{0}', space=vmem, size = 0x80000, scoped, tag = 'input window, operand 4']
    #allocation12 [shape = 'u8[32768]{0}', space=vmem, size = 0x8000, scoped, tag = 'output window, operand 0']
    %11 = vsyncpa [#allocation4], 0
    %12 = vsyncpa [#allocation7], 0
    %13 = vsyncpa [#allocation10], 0
    %14 = vsyncpa [#allocation5], 0
    %s15 = scalar_lea.sflag [#allocation5], 1
    %16 = vsyncpa %s15, 0
    loop: start=0, step=1, limit=4
    $region2: #{tpu_custom_call.1} parent=1 // loop_pre_header
      _
    $region3: #{tpu_custom_call.1} parent=1 // loop_header
      %s18 = sphi 0, %s22
      %p19 = scmp.ge.s32.totalorder %s18, 4
      %s26 = sphi 0, %s26
      %s28 = sphi 0, %s26
      %s29 = sphi 0, %s28
      %s43 = sphi 0, %s29
      %s47 = sphi 0, %s47
      %s49 = sphi 0, %s47
      %s50 = sphi 0, %s49
      %s64 = sphi 0, %s50
      %s68 = sphi 0, %s68
      %s70 = sphi 0, %s68
      %s71 = sphi 0, %s70
      %s85 = sphi 0, %s71
      %s89 = sphi 0, %s89
      %s91 = sphi 0, %s89
      %s92 = sphi 0, %s91
      %s106 = sphi 0, %s92
      %s112 = sphi 0, %s114
      %s115 = sphi 0, %s112
      %s116 = sphi 0, %s115
      %s132 = sphi 0, %s116
      %s138 = sphi 0, %s140
      %s141 = sphi 0, %s138
      %s142 = sphi 0, %s141
      %s158 = sphi 0, %s142
      %s164 = sphi 0, %s166
      %s167 = sphi 0, %s164
      %s168 = sphi 0, %s167
      %s184 = sphi 0, %s168
    $region4: #{tpu_custom_call.1} parent=1 // loop_header_branch
      %21 = sbr.rel (%p19) target = $region8
    $region5: #{tpu_custom_call.1} parent=1 // loop_body
      %s23 = ssub.s32 %s18, 1
      %s24 = ssub.s32 %s18, 2
      %s25 = sadd.s32 %s18, 1
      %s27 = sadd.s32 %s26, 1
      %p30 = scmp.eq.s32.totalorder %s18, 1
      %p31 = scmp.ne.s32.totalorder %s26, %s28
      %p32 = scmp.eq.s32.totalorder %s18, 0
      %p33 = por %p31, %p32
      %p34 = scmp.ne.s32.totalorder %s26, %s28
      %p35 = scmp.eq.s32.totalorder %s23, 1
      %p36 = por %p34, %p35
      %p37 = scmp.ne.s32.totalorder %s28, %s29
      %p38 = scmp.eq.s32.totalorder %s23, 0
      %p39 = por %p37, %p38
      %p40 = scmp.ne.s32.totalorder %s28, %s29
      %p41 = scmp.eq.s32.totalorder %s24, 1
      %p42 = por %p40, %p41
      %p44 = scmp.ne.s32.totalorder %s29, %s43
      %p45 = scmp.eq.s32.totalorder %s24, 0
      %p46 = por %p44, %p45
      %s48 = sadd.s32 %s47, 1
      %p51 = scmp.eq.s32.totalorder %s18, 1
      %p52 = scmp.ne.s32.totalorder %s47, %s49
      %p53 = scmp.eq.s32.totalorder %s18, 0
      %p54 = por %p52, %p53
      %p55 = scmp.ne.s32.totalorder %s47, %s49
      %p56 = scmp.eq.s32.totalorder %s23, 1
      %p57 = por %p55, %p56
      %p58 = scmp.ne.s32.totalorder %s49, %s50
      %p59 = scmp.eq.s32.totalorder %s23, 0
      %p60 = por %p58, %p59
      %p61 = scmp.ne.s32.totalorder %s49, %s50
      %p62 = scmp.eq.s32.totalorder %s24, 1
      %p63 = por %p61, %p62
      %p65 = scmp.ne.s32.totalorder %s50, %s64
      %p66 = scmp.eq.s32.totalorder %s24, 0
      %p67 = por %p65, %p66
      %s69 = sadd.s32 %s68, 1
      %p72 = scmp.eq.s32.totalorder %s18, 1
      %p73 = scmp.ne.s32.totalorder %s68, %s70
      %p74 = scmp.eq.s32.totalorder %s18, 0
      %p75 = por %p73, %p74
      %p76 = scmp.ne.s32.totalorder %s68, %s70
      %p77 = scmp.eq.s32.totalorder %s23, 1
      %p78 = por %p76, %p77
      %p79 = scmp.ne.s32.totalorder %s70, %s71
      %p80 = scmp.eq.s32.totalorder %s23, 0
      %p81 = por %p79, %p80
      %p82 = scmp.ne.s32.totalorder %s70, %s71
      %p83 = scmp.eq.s32.totalorder %s24, 1
      %p84 = por %p82, %p83
      %p86 = scmp.ne.s32.totalorder %s71, %s85
      %p87 = scmp.eq.s32.totalorder %s24, 0
      %p88 = por %p86, %p87
      %s90 = sadd.s32 %s89, 1
      %p93 = scmp.eq.s32.totalorder %s18, 1
      %p94 = scmp.ne.s32.totalorder %s89, %s91
      %p95 = scmp.eq.s32.totalorder %s18, 0
      %p96 = por %p94, %p95
      %p97 = scmp.ne.s32.totalorder %s89, %s91
      %p98 = scmp.eq.s32.totalorder %s23, 1
      %p99 = por %p97, %p98
      %p100 = scmp.ne.s32.totalorder %s91, %s92
      %p101 = scmp.eq.s32.totalorder %s23, 0
      %p102 = por %p100, %p101
      %p103 = scmp.ne.s32.totalorder %s91, %s92
      %p104 = scmp.eq.s32.totalorder %s24, 1
      %p105 = por %p103, %p104
      %p107 = scmp.ne.s32.totalorder %s92, %s106
      %p108 = scmp.eq.s32.totalorder %s24, 0
      %p109 = por %p107, %p108
      %s110 = ssub.s32 %s18, %s25
      %p111 = scmp.eq.s32.totalorder %s110, 0
      %s113 = sadd.s32 %s112, 1
      %s114 = scalar_select %p111, %s112, %s113
      %p117 = pneg %p111
      %p118 = scmp.eq.s32.totalorder %s18, 1
      %p119 = por %p117, %p118
      %p120 = scmp.ne.s32.totalorder %s112, %s115
      %p121 = scmp.eq.s32.totalorder %s18, 0
      %p122 = por %p120, %p121
      %p123 = scmp.ne.s32.totalorder %s112, %s115
      %p124 = scmp.eq.s32.totalorder %s23, 1
      %p125 = por %p123, %p124
      %p126 = scmp.ne.s32.totalorder %s115, %s116
      %p127 = scmp.eq.s32.totalorder %s23, 0
      %p128 = por %p126, %p127
      %p129 = scmp.ne.s32.totalorder %s115, %s116
      %p130 = scmp.eq.s32.totalorder %s24, 1
      %p131 = por %p129, %p130
      %p133 = scmp.ne.s32.totalorder %s116, %s132
      %p134 = scmp.eq.s32.totalorder %s24, 0
      %p135 = por %p133, %p134
      %s136 = ssub.s32 %s18, %s25
      %p137 = scmp.eq.s32.totalorder %s136, 0
      %s139 = sadd.s32 %s138, 1
      %s140 = scalar_select %p137, %s138, %s139
      %p143 = pneg %p137
      %p144 = scmp.eq.s32.totalorder %s18, 1
      %p145 = por %p143, %p144
      %p146 = scmp.ne.s32.totalorder %s138, %s141
      %p147 = scmp.eq.s32.totalorder %s18, 0
      %p148 = por %p146, %p147
      %p149 = scmp.ne.s32.totalorder %s138, %s141
      %p150 = scmp.eq.s32.totalorder %s23, 1
      %p151 = por %p149, %p150
      %p152 = scmp.ne.s32.totalorder %s141, %s142
      %p153 = scmp.eq.s32.totalorder %s23, 0
      %p154 = por %p152, %p153
      %p155 = scmp.ne.s32.totalorder %s141, %s142
      %p156 = scmp.eq.s32.totalorder %s24, 1
      %p157 = por %p155, %p156
      %p159 = scmp.ne.s32.totalorder %s142, %s158
      %p160 = scmp.eq.s32.totalorder %s24, 0
      %p161 = por %p159, %p160
      %s162 = ssub.s32 %s18, %s25
      %p163 = scmp.eq.s32.totalorder %s162, 0
      %s165 = sadd.s32 %s164, 1
      %s166 = scalar_select %p163, %s164, %s165
      %p169 = pneg %p163
      %p170 = scmp.eq.s32.totalorder %s18, 1
      %p171 = por %p169, %p170
      %p172 = scmp.ne.s32.totalorder %s164, %s167
      %p173 = scmp.eq.s32.totalorder %s18, 0
      %p174 = por %p172, %p173
      %p175 = scmp.ne.s32.totalorder %s164, %s167
      %p176 = scmp.eq.s32.totalorder %s23, 1
      %p177 = por %p175, %p176
      %p178 = scmp.ne.s32.totalorder %s167, %s168
      %p179 = scmp.eq.s32.totalorder %s23, 0
      %p180 = por %p178, %p179
      %p181 = scmp.ne.s32.totalorder %s167, %s168
      %p182 = scmp.eq.s32.totalorder %s24, 1
      %p183 = por %p181, %p182
      %p185 = scmp.ne.s32.totalorder %s168, %s184
      %p186 = scmp.eq.s32.totalorder %s24, 0
      %p187 = por %p185, %p186
      %p188 = scmp.le.s32.totalorder 1, %s18
      %p189 = scmp.lt.s32.totalorder %s18, 3
      %p190 = pnand %p188, %p189
      %p191 = pneg %p190
      // Predicated region
      $region9: #{tpu_custom_call.1} parent=5 // pred_check
        _
      $region10: #{tpu_custom_call.1} parent=5 // pred_check_branch
        %193 = sbr.rel (%p190) target = $region12
      $region11: #{tpu_custom_call.1} parent=5 // pred_region
        %s194 = ssub.s32 %s18, 1
        // Predicated region
        $region13: #{tpu_custom_call.1} parent=11 // pred_check
          %p195 = pneg %p39
        $region14: #{tpu_custom_call.1} parent=11 // pred_check_branch
          %197 = sbr.rel (%p195) target = $region16
        $region15: #{tpu_custom_call.1} parent=11 // pred_region
          %s199 = ssub.s32 128, 128
          %200 = vsyncadd [#allocation4], %s199
          %s202 = sshll.u32 [#allocation3], 4
          %s203 = int_to_ptr.vmem [resolvable:$true] %s202
          %205 = dma.hbm_to_vmem [thread:$0]  %s0, 128, %s203, [#allocation4]
        $region16: #{tpu_custom_call.1} parent=11 // pred_fallthru
          _
        // Predicated region
        $region17: #{tpu_custom_call.1} parent=11 // pred_check
          %p206 = pneg %p60
        $region18: #{tpu_custom_call.1} parent=11 // pred_check_branch
          %208 = sbr.rel (%p206) target = $region20
        $region19: #{tpu_custom_call.1} parent=11 // pred_region
          %s210 = ssub.s32 1024, 1024
          %211 = vsyncadd [#allocation7], %s210
          %s212 = sshll.u32 [#allocation6], 4
          %s213 = int_to_ptr.vmem [resolvable:$true] %s212
          %218 = dma.hbm_to_vmem [thread:$0]  %s1, 1024, %s213, [#allocation7], 128, 128, 8
        $region20: #{tpu_custom_call.1} parent=11 // pred_fallthru
          _
        // Predicated region
        $region21: #{tpu_custom_call.1} parent=11 // pred_check
          %p219 = pneg %p81
        $region22: #{tpu_custom_call.1} parent=11 // pred_check_branch
          %221 = sbr.rel (%p219) target = $region24
        $region23: #{tpu_custom_call.1} parent=11 // pred_region
          %s223 = ssub.s32 4096, 4096
          %224 = vsyncadd [#allocation7], %s223
          %s225 = sshll.u32 [#allocation8], 4
          %s226 = int_to_ptr.vmem [resolvable:$true] %s225
          %231 = dma.hbm_to_vmem [thread:$0]  %s2, 4096, %s226, [#allocation7], 128, 128, 8
        $region24: #{tpu_custom_call.1} parent=11 // pred_fallthru
          _
        // Predicated region
        $region25: #{tpu_custom_call.1} parent=11 // pred_check
          %p232 = pneg %p102
        $region26: #{tpu_custom_call.1} parent=11 // pred_check_branch
          %234 = sbr.rel (%p232) target = $region28
        $region27: #{tpu_custom_call.1} parent=11 // pred_region
          %s236 = ssub.s32 128, 128
          %237 = vsyncadd [#allocation10], %s236
          %s239 = sshll.u32 [#allocation9], 4
          %s240 = int_to_ptr.vmem [resolvable:$true] %s239
          %242 = dma.hbm_to_vmem [thread:$0]  %s3, 128, %s240, [#allocation10]
        $region28: #{tpu_custom_call.1} parent=11 // pred_fallthru
          _
      $region12: #{tpu_custom_call.1} parent=5 // pred_fallthru
        _
      %p243 = scmp.lt.s32.totalorder %s18, 2
      // Predicated region
      $region29: #{tpu_custom_call.1} parent=5 // pred_check
        %p244 = pneg %p243
      $region30: #{tpu_custom_call.1} parent=5 // pred_check_branch
        %246 = sbr.rel (%p244) target = $region32
      $region31: #{tpu_custom_call.1} parent=5 // pred_region
        // Predicated region
        $region33: #{tpu_custom_call.1} parent=31 // pred_check
          %p247 = pneg %p122
        $region34: #{tpu_custom_call.1} parent=31 // pred_check_branch
          %249 = sbr.rel (%p247) target = $region36
        $region35: #{tpu_custom_call.1} parent=31 // pred_region
          %s250 = sand.u32 %s18, 1
          %s251 = scalar_lea.sflag [#allocation4], %s250
          %s252 = sand.u32 %s112, 1
          %s253 = smul.addr %s252, 512
          %s254 = scalar_lea.vmem [#allocation11], %s253
          %s255 = smul.u32 4, %s18
          %s257 = ssub.s32 8192, 8192
          %258 = vsyncadd %s251, %s257
          %s259 = smul.addr %s255, 64
          %s260 = scalar_lea.hbm %s4, %s259
          %s261 = sshll.u32 %s254, 4
          %s262 = int_to_ptr.vmem [resolvable:$true] %s261
          %267 = dma.hbm_to_vmem [thread:$0]  %s260, 8192, %s262, %s251, 512, 256, 16
        $region36: #{tpu_custom_call.1} parent=31 // pred_fallthru
          _
        // Predicated region
        $region37: #{tpu_custom_call.1} parent=31 // pred_check
          %p268 = pneg %p148
        $region38: #{tpu_custom_call.1} parent=31 // pred_check_branch
          %270 = sbr.rel (%p268) target = $region40
        $region39: #{tpu_custom_call.1} parent=31 // pred_region
          %s271 = smul.u32 4, %s18
          %p272 = scmp.lt.s32.totalorder %s271, 7
          %s273 = scalar_select %p272, %s271, 7
          %s274 = scalar_lea.vmem %s5, %s273
          %s275 = smul.u32 4, %s18
        $region40: #{tpu_custom_call.1} parent=31 // pred_fallthru
          _
      $region32: #{tpu_custom_call.1} parent=5 // pred_fallthru
        _
      %p276 = scmp.le.s32.totalorder 1, %s18
      %p277 = scmp.lt.s32.totalorder %s18, 3
      %p278 = pnand %p276, %p277
      %p279 = pneg %p278
      // Predicated region
      $region41: #{tpu_custom_call.1} parent=5 // pred_check
        _
      $region42: #{tpu_custom_call.1} parent=5 // pred_check_branch
        %281 = sbr.rel (%p278) target = $region44
      $region43: #{tpu_custom_call.1} parent=5 // pred_region
        %s282 = ssub.s32 %s18, 1
        // Predicated region
        $region45: #{tpu_custom_call.1} parent=43 // pred_check
          %p283 = pneg %p39
        $region46: #{tpu_custom_call.1} parent=43 // pred_check_branch
          %285 = sbr.rel (%p283) target = $region48
        $region47: #{tpu_custom_call.1} parent=43 // pred_region
          %286 = dma.done [#allocation4], 128
        $region48: #{tpu_custom_call.1} parent=43 // pred_fallthru
          _
        // Predicated region
        $region49: #{tpu_custom_call.1} parent=43 // pred_check
          %p287 = pneg %p60
        $region50: #{tpu_custom_call.1} parent=43 // pred_check_branch
          %289 = sbr.rel (%p287) target = $region52
        $region51: #{tpu_custom_call.1} parent=43 // pred_region
          %290 = dma.done [#allocation7], 1024
        $region52: #{tpu_custom_call.1} parent=43 // pred_fallthru
          _
        // Predicated region
        $region53: #{tpu_custom_call.1} parent=43 // pred_check
          %p291 = pneg %p81
        $region54: #{tpu_custom_call.1} parent=43 // pred_check_branch
          %293 = sbr.rel (%p291) target = $region56
        $region55: #{tpu_custom_call.1} parent=43 // pred_region
          %294 = dma.done [#allocation7], 4096
        $region56: #{tpu_custom_call.1} parent=43 // pred_fallthru
          _
        // Predicated region
        $region57: #{tpu_custom_call.1} parent=43 // pred_check
          %p295 = pneg %p102
        $region58: #{tpu_custom_call.1} parent=43 // pred_check_branch
          %297 = sbr.rel (%p295) target = $region60
        $region59: #{tpu_custom_call.1} parent=43 // pred_region
          %298 = dma.done [#allocation10], 128
        $region60: #{tpu_custom_call.1} parent=43 // pred_fallthru
          _
        %s299 = sand.u32 %s23, 1
        %s300 = scalar_lea.sflag [#allocation4], %s299
        %s301 = sand.u32 %s115, 1
        %s302 = smul.addr %s301, 512
        %s303 = scalar_lea.vmem [#allocation11], %s302
        // Predicated region
        $region61: #{tpu_custom_call.1} parent=43 // pred_check
          %p304 = pneg %p128
        $region62: #{tpu_custom_call.1} parent=43 // pred_check_branch
          %306 = sbr.rel (%p304) target = $region64
        $region63: #{tpu_custom_call.1} parent=43 // pred_region
          %307 = dma.done %s300, 8192
        $region64: #{tpu_custom_call.1} parent=43 // pred_fallthru
          _
        %p308 = pneg %p39
        %p309 = pneg %p36
        %p310 = pneg %p60
        %p311 = pneg %p57
        %p312 = pneg %p81
        %p313 = pneg %p78
        %p314 = pneg %p102
        %p315 = pneg %p99
        %s316 = sand.u32 %s23, 1
        %s317 = scalar_lea.sflag [#allocation4], %s316
        %s318 = sand.u32 %s115, 1
        %s319 = smul.addr %s318, 512
        %s320 = scalar_lea.vmem [#allocation11], %s319
        %p321 = pneg %p128
        %p322 = pneg %p125
        %s323 = smul.u32 4, %s23
        %p324 = scmp.lt.s32.totalorder %s323, 7
        %s325 = scalar_select %p324, %s323, 7
        %s326 = scalar_lea.vmem %s5, %s325
        %p327 = pneg %p154
        %p328 = pneg %p151
        %p329 = pneg %p180
        %p330 = pneg %p177
        %s331 = sand.u32 %s167, 1
        %s332 = scalar_lea.sflag [#allocation5], %s331
        %s333 = sand.u32 %s167, 1
        %s334 = smul.addr %s333, 32
        %s335 = scalar_lea.vmem [#allocation12], %s334
        %s336 = smul.u32 4, %s23
        %s337 = smul.u32 4, %s23
        %p338 = scmp.lt.s32.totalorder %s337, 7
        %s339 = scalar_select %p338, %s337, 7
        %s340 = scalar_lea.vmem %s5, %s339
        %s341 = smul.u32 4, %s23
        %s342 = smul.u32 4, %s23
        %p344 = scmp.eq.s32.totalorder %s23, 0
        // Predicated region
        $region65: #{tpu_custom_call.1} parent=43 // pred_check
          %p345 = pneg %p344
        $region66: #{tpu_custom_call.1} parent=43 // pred_check_branch
          %347 = sbr.rel (%p345) target = $region68
        $region67: #{tpu_custom_call.1} parent=43 // pred_region
          %v348 = vld [vmem:[#allocation9] ss:$4 sm:$0x3]
          %s349 = scalar_lea.vmem [#allocation9], 1
          %v350 = vld [vmem:[%s349] ss:$4 sm:$0x3]
          %s351 = scalar_lea.vmem [#allocation9], 2
          %v352 = vld [vmem:[%s351] ss:$4 sm:$0x3]
          %s353 = scalar_lea.vmem [#allocation9], 3
          %v354 = vld [vmem:[%s353] ss:$4 sm:$0x3]
          %v355 = vld [vmem:[#allocation3] sm:$0xff]
          %v356 = vpack.c.bf16 %v355, %v355
          %v357 = vld [vmem:[#allocation6] sm:$0xff]
          %v358 = vld [vmem:[#allocation6 + $0x8] sm:$0xff]
          %v359 = vld [vmem:[#allocation6 + $0x10] sm:$0xff]
          %v360 = vld [vmem:[#allocation6 + $0x18] sm:$0xff]
          %v361 = vld [vmem:[#allocation6 + $0x20] sm:$0xff]
          %v362 = vld [vmem:[#allocation6 + $0x28] sm:$0xff]
          %v363 = vld [vmem:[#allocation6 + $0x30] sm:$0xff]
          %v364 = vld [vmem:[#allocation6 + $0x38] sm:$0xff]
          %v366 = vlaneseq
          %v367 = vshrl.u32 %v366, 7
          %v368 = vsub.s32 0, %v367
          %v369 = vrot.slane %v348, %v368
          %v370 = vlaneseq
          %v371 = vshrl.u32 %v370, 7
          %v372 = vsub.s32 1, %v371
          %v373 = vrot.slane %v348, %v372
          %v384 = vunpack.c.l.b16 %v357
          %v385 = vunpack.c.h.b16 %v357
          %v386 = vunpack.c.l.b16 %v358
          %v387 = vunpack.c.h.b16 %v358
          %v388 = vunpack.c.l.b16 %v359
          %v389 = vunpack.c.h.b16 %v359
          %v390 = vunpack.c.l.b16 %v360
          %v391 = vunpack.c.h.b16 %v360
          %v392 = vunpack.c.l.b16 %v361
          %v393 = vunpack.c.h.b16 %v361
          %v394 = vunpack.c.l.b16 %v362
          %v395 = vunpack.c.h.b16 %v362
          %v396 = vunpack.c.l.b16 %v363
          %v397 = vunpack.c.h.b16 %v363
          %v398 = vunpack.c.l.b16 %v364
          %v399 = vunpack.c.h.b16 %v364
          %v400 = vpack.c.b16 %v386, %v384
          %v401 = vpack.c.b16 %v387, %v385
          %v402 = vpack.c.b16 %v390, %v388
          %v403 = vpack.c.b16 %v391, %v389
          %v404 = vpack.c.b16 %v394, %v392
          %v405 = vpack.c.b16 %v395, %v393
          %v406 = vpack.c.b16 %v398, %v396
          %v407 = vpack.c.b16 %v399, %v397
          %vm416 = vcmask 523264
          %v418 = vsel %vm416, %v356, 0
          %420 = vmatprep.subr.bf16.mxu0 0
          %421 = vmatpush1.bf16.msra.mxu0 0
          %422 = vmatprep.subr.bf16.mxu0 0
          %423 = vmatpush1.bf16.msra.mxu0 0
          %424 = vmatprep.subr.bf16.mxu0 0
          %425 = vmatpush1.bf16.msra.mxu0 0
          %426 = vmatprep.subr.bf16.mxu0 0
          %427 = vmatpush1.bf16.msra.mxu0 0
          %428 = vmatprep.subr.bf16.mxu0 %v407
          %429 = vmatpush1.bf16.msra.mxu0 %v406
          %430 = vmatprep.subr.bf16.mxu0 %v405
          %431 = vmatpush1.bf16.msra.mxu0 %v404
          %432 = vmatprep.subr.bf16.mxu0 %v403
          %433 = vmatpush1.bf16.msra.mxu0 %v402
          %434 = vmatprep.subr.bf16.mxu0 %v401
          %435 = vmatpush1.bf16.msra.mxu0 %v400
          %436 = vmatprep.subr.bf16.mxu0 0
          %437 = vmatpush2.bf16.msra.mxu0 0
          %438 = vmatprep.subr.bf16.mxu0 0
          %439 = vmatpush2.bf16.msra.mxu0 0
          %440 = vmatprep.subr.bf16.mxu0 0
          %441 = vmatpush2.bf16.msra.mxu0 0
          %442 = vmatprep.subr.bf16.mxu0 0
          %443 = vmatpush2.bf16.msra.mxu0 0
          %444 = vmatprep.subr.bf16.mxu0 0
          %445 = vmatpush2.bf16.msra.mxu0 0
          %446 = vmatprep.subr.bf16.mxu0 0
          %447 = vmatpush2.bf16.msra.mxu0 0
          %448 = vmatprep.subr.bf16.mxu0 0
          %449 = vmatpush2.bf16.msra.mxu0 0
          %450 = vmatprep.subr.bf16.mxu0 0
          %451 = vmatpush2.bf16.msra.mxu0 0
          %452 = vmatprep.mubr.bf16.mxu0 0
          %453 = vmatmul.mubr.bf16.gmra.mxu0 %v418
          %v454 = vpop.f32.mrf.mxu0
          %v455 = vadd.f32 %v369, %v454
          %v456 = vpop.f32.mrf.mxu0
          %v457 = vadd.f32 %v373, %v456
          %v458 = vpop.f32.mrf.mxu0
          %v459 = vpop.f32.mrf.mxu0
          %460 = vdwg.mxu0
          %v461 = vmax.f32 %v455, 0.0
          %v462 = vmax.f32 %v457, 0.0
          %v463 = vpack.c.bf16 %v461, %v461
          %v464 = vpack.c.bf16 %v462, %v462
          %v465 = vld [vmem:[#allocation8] sm:$0xff]
          %v466 = vld [vmem:[#allocation8 + $0x8] sm:$0xff]
          %v467 = vld [vmem:[#allocation8 + $0x10] sm:$0xff]
          %v468 = vld [vmem:[#allocation8 + $0x18] sm:$0xff]
          %v469 = vld [vmem:[#allocation8 + $0x20] sm:$0xff]
          %v470 = vld [vmem:[#allocation8 + $0x28] sm:$0xff]
          %v471 = vld [vmem:[#allocation8 + $0x30] sm:$0xff]
          %v472 = vld [vmem:[#allocation8 + $0x38] sm:$0xff]
          %v473 = vld [vmem:[#allocation8 + $0x40] sm:$0xff]
          %v474 = vld [vmem:[#allocation8 + $0x48] sm:$0xff]
          %v475 = vld [vmem:[#allocation8 + $0x50] sm:$0xff]
          %v476 = vld [vmem:[#allocation8 + $0x58] sm:$0xff]
          %v477 = vld [vmem:[#allocation8 + $0x60] sm:$0xff]
          %v478 = vld [vmem:[#allocation8 + $0x68] sm:$0xff]
          %v479 = vld [vmem:[#allocation8 + $0x70] sm:$0xff]
          %v480 = vld [vmem:[#allocation8 + $0x78] sm:$0xff]
          %v481 = vld [vmem:[#allocation8 + $0x80] sm:$0xff]
          %v482 = vld [vmem:[#allocation8 + $0x88] sm:$0xff]
          %v483 = vld [vmem:[#allocation8 + $0x90] sm:$0xff]
          %v484 = vld [vmem:[#allocation8 + $0x98] sm:$0xff]
          %v485 = vld [vmem:[#allocation8 + $0xa0] sm:$0xff]
          %v486 = vld [vmem:[#allocation8 + $0xa8] sm:$0xff]
          %v487 = vld [vmem:[#allocation8 + $0xb0] sm:$0xff]
          %v488 = vld [vmem:[#allocation8 + $0xb8] sm:$0xff]
          %v489 = vld [vmem:[#allocation8 + $0xc0] sm:$0xff]
          %v490 = vld [vmem:[#allocation8 + $0xc8] sm:$0xff]
          %v491 = vld [vmem:[#allocation8 + $0xd0] sm:$0xff]
          %v492 = vld [vmem:[#allocation8 + $0xd8] sm:$0xff]
          %v493 = vld [vmem:[#allocation8 + $0xe0] sm:$0xff]
          %v494 = vld [vmem:[#allocation8 + $0xe8] sm:$0xff]
          %v495 = vld [vmem:[#allocation8 + $0xf0] sm:$0xff]
          %v496 = vld [vmem:[#allocation8 + $0xf8] sm:$0xff]
          %v498 = vlaneseq
          %v499 = vshrl.u32 %v498, 7
          %v500 = vsub.s32 0, %v499
          %v501 = vrot.slane %v350, %v500
          %v502 = vlaneseq
          %v503 = vshrl.u32 %v502, 7
          %v504 = vsub.s32 1, %v503
          %v505 = vrot.slane %v350, %v504
          %v540 = vunpack.c.l.b16 %v465
          %v541 = vunpack.c.h.b16 %v465
          %v542 = vunpack.c.l.b16 %v466
          %v543 = vunpack.c.h.b16 %v466
          %v544 = vunpack.c.l.b16 %v467
          %v545 = vunpack.c.h.b16 %v467
          %v546 = vunpack.c.l.b16 %v468
          %v547 = vunpack.c.h.b16 %v468
          %v548 = vunpack.c.l.b16 %v469
          %v549 = vunpack.c.h.b16 %v469
          %v550 = vunpack.c.l.b16 %v470
          %v551 = vunpack.c.h.b16 %v470
          %v552 = vunpack.c.l.b16 %v471
          %v553 = vunpack.c.h.b16 %v471
          %v554 = vunpack.c.l.b16 %v472
          %v555 = vunpack.c.h.b16 %v472
          %v556 = vunpack.c.l.b16 %v473
          %v557 = vunpack.c.h.b16 %v473
          %v558 = vunpack.c.l.b16 %v474
          %v559 = vunpack.c.h.b16 %v474
          %v560 = vunpack.c.l.b16 %v475
          %v561 = vunpack.c.h.b16 %v475
          %v562 = vunpack.c.l.b16 %v476
          %v563 = vunpack.c.h.b16 %v476
          %v564 = vunpack.c.l.b16 %v477
          %v565 = vunpack.c.h.b16 %v477
          %v566 = vunpack.c.l.b16 %v478
          %v567 = vunpack.c.h.b16 %v478
          %v568 = vunpack.c.l.b16 %v479
          %v569 = vunpack.c.h.b16 %v479
          %v570 = vunpack.c.l.b16 %v480
          %v571 = vunpack.c.h.b16 %v480
          %v572 = vunpack.c.l.b16 %v481
          %v573 = vunpack.c.h.b16 %v481
          %v574 = vunpack.c.l.b16 %v482
          %v575 = vunpack.c.h.b16 %v482
          %v576 = vunpack.c.l.b16 %v483
          %v577 = vunpack.c.h.b16 %v483
          %v578 = vunpack.c.l.b16 %v484
          %v579 = vunpack.c.h.b16 %v484
          %v580 = vunpack.c.l.b16 %v485
          %v581 = vunpack.c.h.b16 %v485
          %v582 = vunpack.c.l.b16 %v486
          %v583 = vunpack.c.h.b16 %v486
          %v584 = vunpack.c.l.b16 %v487
          %v585 = vunpack.c.h.b16 %v487
          %v586 = vunpack.c.l.b16 %v488
          %v587 = vunpack.c.h.b16 %v488
          %v588 = vunpack.c.l.b16 %v489
          %v589 = vunpack.c.h.b16 %v489
          %v590 = vunpack.c.l.b16 %v490
          %v591 = vunpack.c.h.b16 %v490
          %v592 = vunpack.c.l.b16 %v491
          %v593 = vunpack.c.h.b16 %v491
          %v594 = vunpack.c.l.b16 %v492
          %v595 = vunpack.c.h.b16 %v492
          %v596 = vunpack.c.l.b16 %v493
          %v597 = vunpack.c.h.b16 %v493
          %v598 = vunpack.c.l.b16 %v494
          %v599 = vunpack.c.h.b16 %v494
          %v600 = vunpack.c.l.b16 %v495
          %v601 = vunpack.c.h.b16 %v495
          %v602 = vunpack.c.l.b16 %v496
          %v603 = vunpack.c.h.b16 %v496
          %v604 = vpack.c.b16 %v542, %v540
          %v605 = vpack.c.b16 %v543, %v541
          %v606 = vpack.c.b16 %v546, %v544
          %v607 = vpack.c.b16 %v547, %v545
          %v608 = vpack.c.b16 %v550, %v548
          %v609 = vpack.c.b16 %v551, %v549
          %v610 = vpack.c.b16 %v554, %v552
          %v611 = vpack.c.b16 %v555, %v553
          %v612 = vpack.c.b16 %v558, %v556
          %v613 = vpack.c.b16 %v559, %v557
          %v614 = vpack.c.b16 %v562, %v560
          %v615 = vpack.c.b16 %v563, %v561
          %v616 = vpack.c.b16 %v566, %v564
          %v617 = vpack.c.b16 %v567, %v565
          %v618 = vpack.c.b16 %v570, %v568
          %v619 = vpack.c.b16 %v571, %v569
          %v620 = vpack.c.b16 %v574, %v572
          %v621 = vpack.c.b16 %v575, %v573
          %v622 = vpack.c.b16 %v578, %v576
          %v623 = vpack.c.b16 %v579, %v577
          %v624 = vpack.c.b16 %v582, %v580
          %v625 = vpack.c.b16 %v583, %v581
          %v626 = vpack.c.b16 %v586, %v584
          %v627 = vpack.c.b16 %v587, %v585
          %v628 = vpack.c.b16 %v590, %v588
          %v629 = vpack.c.b16 %v591, %v589
          %v630 = vpack.c.b16 %v594, %v592
          %v631 = vpack.c.b16 %v595, %v593
          %v632 = vpack.c.b16 %v598, %v596
          %v633 = vpack.c.b16 %v599, %v597
          %v634 = vpack.c.b16 %v602, %v600
          %v635 = vpack.c.b16 %v603, %v601
          %668 = vmatprep.subr.bf16.mxu0 %v619
          %669 = vmatpush1.bf16.msra.mxu0 %v618
          %670 = vmatprep.subr.bf16.mxu0 %v617
          %671 = vmatpush1.bf16.msra.mxu0 %v616
          %672 = vmatprep.subr.bf16.mxu0 %v615
          %673 = vmatpush1.bf16.msra.mxu0 %v614
          %674 = vmatprep.subr.bf16.mxu0 %v613
          %675 = vmatpush1.bf16.msra.mxu0 %v612
          %676 = vmatprep.subr.bf16.mxu0 %v611
          %677 = vmatpush1.bf16.msra.mxu0 %v610
          %678 = vmatprep.subr.bf16.mxu0 %v609
          %679 = vmatpush1.bf16.msra.mxu0 %v608
          %680 = vmatprep.subr.bf16.mxu0 %v607
          %681 = vmatpush1.bf16.msra.mxu0 %v606
          %682 = vmatprep.subr.bf16.mxu0 %v605
          %683 = vmatpush1.bf16.msra.mxu0 %v604
          %684 = vmatprep.subr.bf16.mxu0 %v635
          %685 = vmatpush2.bf16.msra.mxu0 %v634
          %686 = vmatprep.subr.bf16.mxu0 %v633
          %687 = vmatpush2.bf16.msra.mxu0 %v632
          %688 = vmatprep.subr.bf16.mxu0 %v631
          %689 = vmatpush2.bf16.msra.mxu0 %v630
          %690 = vmatprep.subr.bf16.mxu0 %v629
          %691 = vmatpush2.bf16.msra.mxu0 %v628
          %692 = vmatprep.subr.bf16.mxu0 %v627
          %693 = vmatpush2.bf16.msra.mxu0 %v626
          %694 = vmatprep.subr.bf16.mxu0 %v625
          %695 = vmatpush2.bf16.msra.mxu0 %v624
          %696 = vmatprep.subr.bf16.mxu0 %v623
          %697 = vmatpush2.bf16.msra.mxu0 %v622
          %698 = vmatprep.subr.bf16.mxu0 %v621
          %699 = vmatpush2.bf16.msra.mxu0 %v620
          %700 = vmatprep.mubr.bf16.mxu0 %v464
          %701 = vmatmul.mubr.bf16.gmra.mxu0 %v463
          %v702 = vpop.f32.mrf.mxu0
          %v703 = vadd.f32 %v501, %v702
          %v704 = vpop.f32.mrf.mxu0
          %v705 = vadd.f32 %v505, %v704
          %v706 = vpop.f32.mrf.mxu0
          %v707 = vpop.f32.mrf.mxu0
          %708 = vdwg.mxu0
          %v709 = vrot.slane %v703, 4
          %v710 = vadd.f32 %v703, %v709
          %v711 = vrot.slane %v710, 2
          %v712 = vadd.f32 %v710, %v711
          %v713 = vrot.slane %v712, 1
          %v714 = vadd.f32 %v712, %v713
          %v715 = vrot.slane %v705, 4
          %v716 = vadd.f32 %v705, %v715
          %v717 = vrot.slane %v716, 2
          %v718 = vadd.f32 %v716, %v717
          %v719 = vrot.slane %v718, 1
          %v720 = vadd.f32 %v718, %v719
          %v721 = vrcp.pop 8.0
          %v722 = vmul.f32 %v714, %v721
          %v723 = vmul.f32 %v720, %v721
          %v724 = vmul.f32 %v703, %v703
          %v725 = vmul.f32 %v705, %v705
          %v726 = vrot.slane %v724, 4
          %v727 = vadd.f32 %v724, %v726
          %v728 = vrot.slane %v727, 2
          %v729 = vadd.f32 %v727, %v728
          %v730 = vrot.slane %v729, 1
          %v731 = vadd.f32 %v729, %v730
          %v732 = vrot.slane %v725, 4
          %v733 = vadd.f32 %v725, %v732
          %v734 = vrot.slane %v733, 2
          %v735 = vadd.f32 %v733, %v734
          %v736 = vrot.slane %v735, 1
          %v737 = vadd.f32 %v735, %v736
          %v738 = vmul.f32 %v731, %v721
          %v739 = vmul.f32 %v737, %v721
          %v740 = vmul.f32 %v722, %v722
          %v741 = vmul.f32 %v723, %v723
          %v742 = vsub.f32 %v738, %v740
          %v743 = vsub.f32 %v739, %v741
          %v744 = vmax.f32 %v742, 0.0
          %v745 = vmax.f32 %v743, 0.0
          %v746 = vadd.f32 %v744, 1e-05
          %v747 = vadd.f32 %v745, 1e-05
          %v748 = vrsqrt.pop %v746
          %v749 = vrsqrt.pop %v747
          %v752 = vcombine.low %v748, %v749
          %v754 = vunpack.c.l.s4 1966171168
          %v755 = vunpack.c.0.s8 %v754
          %v756 = vlaneseq
          %v757 = vshrl.u32 %v756, 7
          %v758 = vsub.s32 %v755, %v757
          %v759 = vrot.slane %v752, %v758
          %v761 = vunpack.c.l.s4 1966171168
          %v762 = vunpack.c.0.s8 %v761
          %v763 = vlaneseq
          %v764 = vshrl.u32 %v763, 7
          %v765 = vsub.s32 %v762, %v764
          %v766 = vrot.slane %v759, %v765
          %v768 = vmul.f32 %v352, %v766
          %v770 = vlaneseq
          %v771 = vshrl.u32 %v770, 7
          %v772 = vsub.s32 0, %v771
          %v773 = vrot.slane %v768, %v772
          %v774 = vlaneseq
          %v775 = vshrl.u32 %v774, 7
          %v776 = vsub.s32 1, %v775
          %v777 = vrot.slane %v768, %v776
          %v780 = vmul.f32 %v722, %v773
          %v781 = vmul.f32 %v723, %v777
          %v784 = vcombine.low %v780, %v781
          %v786 = vunpack.c.l.s4 1966171168
          %v787 = vunpack.c.0.s8 %v786
          %v788 = vlaneseq
          %v789 = vshrl.u32 %v788, 7
          %v790 = vsub.s32 %v787, %v789
          %v791 = vrot.slane %v784, %v790
          %v793 = vunpack.c.l.s4 1966171168
          %v794 = vunpack.c.0.s8 %v793
          %v795 = vlaneseq
          %v796 = vshrl.u32 %v795, 7
          %v797 = vsub.s32 %v794, %v796
          %v798 = vrot.slane %v791, %v797
          %v800 = vsub.f32 %v354, %v798
          %v801 = vmul.f32 %v703, %v773
          %v802 = vmul.f32 %v705, %v777
          %v804 = vlaneseq
          %v805 = vshrl.u32 %v804, 7
          %v806 = vsub.s32 0, %v805
          %v807 = vrot.slane %v800, %v806
          %v808 = vlaneseq
          %v809 = vshrl.u32 %v808, 7
          %v810 = vsub.s32 1, %v809
          %v811 = vrot.slane %v800, %v810
          %v814 = vadd.f32 %v801, %v807
          %v815 = vadd.f32 %v802, %v811
          %v816 = vmax.f32 %v814, 0.0
          %v817 = vmax.f32 %v815, 0.0
          %818 = vst [vmem:[#allocation2] sm:$0xff] %v816
          %819 = vst [vmem:[#allocation2 + $0x8] sm:$0xff] %v817
        $region68: #{tpu_custom_call.1} parent=43 // pred_fallthru
          _
        %v820 = vld [vmem:[#allocation2] sm:$0xff]
        %v821 = vld [vmem:[#allocation2 + $0x8] sm:$0xff]
        %v822 = vpack.c.bf16 %v820, %v820
        %v823 = vpack.c.bf16 %v821, %v821
        %v824 = vld [vmem:[%s303] sm:$0xff]
        %v825 = vld [vmem:[%s303 + $0x8] sm:$0xff]
        %v826 = vld [vmem:[%s303 + $0x10] sm:$0xff]
        %v827 = vld [vmem:[%s303 + $0x18] sm:$0xff]
        %v828 = vld [vmem:[%s303 + $0x20] sm:$0xff]
        %v829 = vld [vmem:[%s303 + $0x28] sm:$0xff]
        %v830 = vld [vmem:[%s303 + $0x30] sm:$0xff]
        %v831 = vld [vmem:[%s303 + $0x38] sm:$0xff]
        %v832 = vld [vmem:[%s303 + $0x40] sm:$0xff]
        %v833 = vld [vmem:[%s303 + $0x48] sm:$0xff]
        %v834 = vld [vmem:[%s303 + $0x50] sm:$0xff]
        %v835 = vld [vmem:[%s303 + $0x58] sm:$0xff]
        %v836 = vld [vmem:[%s303 + $0x60] sm:$0xff]
        %v837 = vld [vmem:[%s303 + $0x68] sm:$0xff]
        %v838 = vld [vmem:[%s303 + $0x70] sm:$0xff]
        %v839 = vld [vmem:[%s303 + $0x78] sm:$0xff]
        %v840 = vld [vmem:[%s303 + $0x80] sm:$0xff]
        %v841 = vld [vmem:[%s303 + $0x88] sm:$0xff]
        %v842 = vld [vmem:[%s303 + $0x90] sm:$0xff]
        %v843 = vld [vmem:[%s303 + $0x98] sm:$0xff]
        %v844 = vld [vmem:[%s303 + $0xa0] sm:$0xff]
        %v845 = vld [vmem:[%s303 + $0xa8] sm:$0xff]
        %v846 = vld [vmem:[%s303 + $0xb0] sm:$0xff]
        %v847 = vld [vmem:[%s303 + $0xb8] sm:$0xff]
        %v848 = vld [vmem:[%s303 + $0xc0] sm:$0xff]
        %v849 = vld [vmem:[%s303 + $0xc8] sm:$0xff]
        %v850 = vld [vmem:[%s303 + $0xd0] sm:$0xff]
        %v851 = vld [vmem:[%s303 + $0xd8] sm:$0xff]
        %v852 = vld [vmem:[%s303 + $0xe0] sm:$0xff]
        %v853 = vld [vmem:[%s303 + $0xe8] sm:$0xff]
        %v854 = vld [vmem:[%s303 + $0xf0] sm:$0xff]
        %v855 = vld [vmem:[%s303 + $0xf8] sm:$0xff]
        %v856 = vld [vmem:[%s303 + $0x100] sm:$0xff]
        %v857 = vld [vmem:[%s303 + $0x108] sm:$0xff]
        %v858 = vld [vmem:[%s303 + $0x110] sm:$0xff]
        %v859 = vld [vmem:[%s303 + $0x118] sm:$0xff]
        %v860 = vld [vmem:[%s303 + $0x120] sm:$0xff]
        %v861 = vld [vmem:[%s303 + $0x128] sm:$0xff]
        %v862 = vld [vmem:[%s303 + $0x130] sm:$0xff]
        %v863 = vld [vmem:[%s303 + $0x138] sm:$0xff]
        %v864 = vld [vmem:[%s303 + $0x140] sm:$0xff]
        %v865 = vld [vmem:[%s303 + $0x148] sm:$0xff]
        %v866 = vld [vmem:[%s303 + $0x150] sm:$0xff]
        %v867 = vld [vmem:[%s303 + $0x158] sm:$0xff]
        %v868 = vld [vmem:[%s303 + $0x160] sm:$0xff]
        %v869 = vld [vmem:[%s303 + $0x168] sm:$0xff]
        %v870 = vld [vmem:[%s303 + $0x170] sm:$0xff]
        %v871 = vld [vmem:[%s303 + $0x178] sm:$0xff]
        %v872 = vld [vmem:[%s303 + $0x180] sm:$0xff]
        %v873 = vld [vmem:[%s303 + $0x188] sm:$0xff]
        %v874 = vld [vmem:[%s303 + $0x190] sm:$0xff]
        %v875 = vld [vmem:[%s303 + $0x198] sm:$0xff]
        %v876 = vld [vmem:[%s303 + $0x1a0] sm:$0xff]
        %v877 = vld [vmem:[%s303 + $0x1a8] sm:$0xff]
        %v878 = vld [vmem:[%s303 + $0x1b0] sm:$0xff]
        %v879 = vld [vmem:[%s303 + $0x1b8] sm:$0xff]
        %v880 = vld [vmem:[%s303 + $0x1c0] sm:$0xff]
        %v881 = vld [vmem:[%s303 + $0x1c8] sm:$0xff]
        %v882 = vld [vmem:[%s303 + $0x1d0] sm:$0xff]
        %v883 = vld [vmem:[%s303 + $0x1d8] sm:$0xff]
        %v884 = vld [vmem:[%s303 + $0x1e0] sm:$0xff]
        %v885 = vld [vmem:[%s303 + $0x1e8] sm:$0xff]
        %v886 = vld [vmem:[%s303 + $0x1f0] sm:$0xff]
        %v887 = vld [vmem:[%s303 + $0x1f8] sm:$0xff]
        %v888 = vld [vmem:[%s340] sm:$0xf]
        %v890 = vlaneseq
        %v891 = vshrl.u32 %v890, 7
        %v892 = vsub.s32 0, %v891
        %v893 = vrot.slane %v888, %v892
        %v894 = vlaneseq
        %v895 = vshrl.u32 %v894, 7
        %v896 = vsub.s32 1, %v895
        %v897 = vrot.slane %v888, %v896
        %v898 = vlaneseq
        %v899 = vshrl.u32 %v898, 7
        %v900 = vsub.s32 2, %v899
        %v901 = vrot.slane %v888, %v900
        %v902 = vlaneseq
        %v903 = vshrl.u32 %v902, 7
        %v904 = vsub.s32 3, %v903
        %v905 = vrot.slane %v888, %v904
        %v974 = vunpack.c.l.b16 %v824
        %v975 = vunpack.c.h.b16 %v824
        %v976 = vunpack.c.l.b16 %v825
        %v977 = vunpack.c.h.b16 %v825
        %v978 = vunpack.c.l.b16 %v826
        %v979 = vunpack.c.h.b16 %v826
        %v980 = vunpack.c.l.b16 %v827
        %v981 = vunpack.c.h.b16 %v827
        %v982 = vunpack.c.l.b16 %v828
        %v983 = vunpack.c.h.b16 %v828
        %v984 = vunpack.c.l.b16 %v829
        %v985 = vunpack.c.h.b16 %v829
        %v986 = vunpack.c.l.b16 %v830
        %v987 = vunpack.c.h.b16 %v830
        %v988 = vunpack.c.l.b16 %v831
        %v989 = vunpack.c.h.b16 %v831
        %v990 = vunpack.c.l.b16 %v832
        %v991 = vunpack.c.h.b16 %v832
        %v992 = vunpack.c.l.b16 %v833
        %v993 = vunpack.c.h.b16 %v833
        %v994 = vunpack.c.l.b16 %v834
        %v995 = vunpack.c.h.b16 %v834
        %v996 = vunpack.c.l.b16 %v835
        %v997 = vunpack.c.h.b16 %v835
        %v998 = vunpack.c.l.b16 %v836
        %v999 = vunpack.c.h.b16 %v836
        %v1000 = vunpack.c.l.b16 %v837
        %v1001 = vunpack.c.h.b16 %v837
        %v1002 = vunpack.c.l.b16 %v838
        %v1003 = vunpack.c.h.b16 %v838
        %v1004 = vunpack.c.l.b16 %v839
        %v1005 = vunpack.c.h.b16 %v839
        %v1006 = vunpack.c.l.b16 %v840
        %v1007 = vunpack.c.h.b16 %v840
        %v1008 = vunpack.c.l.b16 %v841
        %v1009 = vunpack.c.h.b16 %v841
        %v1010 = vunpack.c.l.b16 %v842
        %v1011 = vunpack.c.h.b16 %v842
        %v1012 = vunpack.c.l.b16 %v843
        %v1013 = vunpack.c.h.b16 %v843
        %v1014 = vunpack.c.l.b16 %v844
        %v1015 = vunpack.c.h.b16 %v844
        %v1016 = vunpack.c.l.b16 %v845
        %v1017 = vunpack.c.h.b16 %v845
        %v1018 = vunpack.c.l.b16 %v846
        %v1019 = vunpack.c.h.b16 %v846
        %v1020 = vunpack.c.l.b16 %v847
        %v1021 = vunpack.c.h.b16 %v847
        %v1022 = vunpack.c.l.b16 %v848
        %v1023 = vunpack.c.h.b16 %v848
        %v1024 = vunpack.c.l.b16 %v849
        %v1025 = vunpack.c.h.b16 %v849
        %v1026 = vunpack.c.l.b16 %v850
        %v1027 = vunpack.c.h.b16 %v850
        %v1028 = vunpack.c.l.b16 %v851
        %v1029 = vunpack.c.h.b16 %v851
        %v1030 = vunpack.c.l.b16 %v852
        %v1031 = vunpack.c.h.b16 %v852
        %v1032 = vunpack.c.l.b16 %v853
        %v1033 = vunpack.c.h.b16 %v853
        %v1034 = vunpack.c.l.b16 %v854
        %v1035 = vunpack.c.h.b16 %v854
        %v1036 = vunpack.c.l.b16 %v855
        %v1037 = vunpack.c.h.b16 %v855
        %v1038 = vunpack.c.l.b16 %v856
        %v1039 = vunpack.c.h.b16 %v856
        %v1040 = vunpack.c.l.b16 %v857
        %v1041 = vunpack.c.h.b16 %v857
        %v1042 = vunpack.c.l.b16 %v858
        %v1043 = vunpack.c.h.b16 %v858
        %v1044 = vunpack.c.l.b16 %v859
        %v1045 = vunpack.c.h.b16 %v859
        %v1046 = vunpack.c.l.b16 %v860
        %v1047 = vunpack.c.h.b16 %v860
        %v1048 = vunpack.c.l.b16 %v861
        %v1049 = vunpack.c.h.b16 %v861
        %v1050 = vunpack.c.l.b16 %v862
        %v1051 = vunpack.c.h.b16 %v862
        %v1052 = vunpack.c.l.b16 %v863
        %v1053 = vunpack.c.h.b16 %v863
        %v1054 = vunpack.c.l.b16 %v864
        %v1055 = vunpack.c.h.b16 %v864
        %v1056 = vunpack.c.l.b16 %v865
        %v1057 = vunpack.c.h.b16 %v865
        %v1058 = vunpack.c.l.b16 %v866
        %v1059 = vunpack.c.h.b16 %v866
        %v1060 = vunpack.c.l.b16 %v867
        %v1061 = vunpack.c.h.b16 %v867
        %v1062 = vunpack.c.l.b16 %v868
        %v1063 = vunpack.c.h.b16 %v868
        %v1064 = vunpack.c.l.b16 %v869
        %v1065 = vunpack.c.h.b16 %v869
        %v1066 = vunpack.c.l.b16 %v870
        %v1067 = vunpack.c.h.b16 %v870
        %v1068 = vunpack.c.l.b16 %v871
        %v1069 = vunpack.c.h.b16 %v871
        %v1070 = vunpack.c.l.b16 %v872
        %v1071 = vunpack.c.h.b16 %v872
        %v1072 = vunpack.c.l.b16 %v873
        %v1073 = vunpack.c.h.b16 %v873
        %v1074 = vunpack.c.l.b16 %v874
        %v1075 = vunpack.c.h.b16 %v874
        %v1076 = vunpack.c.l.b16 %v875
        %v1077 = vunpack.c.h.b16 %v875
        %v1078 = vunpack.c.l.b16 %v876
        %v1079 = vunpack.c.h.b16 %v876
        %v1080 = vunpack.c.l.b16 %v877
        %v1081 = vunpack.c.h.b16 %v877
        %v1082 = vunpack.c.l.b16 %v878
        %v1083 = vunpack.c.h.b16 %v878
        %v1084 = vunpack.c.l.b16 %v879
        %v1085 = vunpack.c.h.b16 %v879
        %v1086 = vunpack.c.l.b16 %v880
        %v1087 = vunpack.c.h.b16 %v880
        %v1088 = vunpack.c.l.b16 %v881
        %v1089 = vunpack.c.h.b16 %v881
        %v1090 = vunpack.c.l.b16 %v882
        %v1091 = vunpack.c.h.b16 %v882
        %v1092 = vunpack.c.l.b16 %v883
        %v1093 = vunpack.c.h.b16 %v883
        %v1094 = vunpack.c.l.b16 %v884
        %v1095 = vunpack.c.h.b16 %v884
        %v1096 = vunpack.c.l.b16 %v885
        %v1097 = vunpack.c.h.b16 %v885
        %v1098 = vunpack.c.l.b16 %v886
        %v1099 = vunpack.c.h.b16 %v886
        %v1100 = vunpack.c.l.b16 %v887
        %v1101 = vunpack.c.h.b16 %v887
        %v1102 = vpack.c.b16 %v978, %v974
        %v1103 = vpack.c.b16 %v979, %v975
        %v1104 = vpack.c.b16 %v980, %v976
        %v1105 = vpack.c.b16 %v981, %v977
        %v1106 = vpack.c.b16 %v986, %v982
        %v1107 = vpack.c.b16 %v987, %v983
        %v1108 = vpack.c.b16 %v988, %v984
        %v1109 = vpack.c.b16 %v989, %v985
        %v1110 = vpack.c.b16 %v994, %v990
        %v1111 = vpack.c.b16 %v995, %v991
        %v1112 = vpack.c.b16 %v996, %v992
        %v1113 = vpack.c.b16 %v997, %v993
        %v1114 = vpack.c.b16 %v1002, %v998
        %v1115 = vpack.c.b16 %v1003, %v999
        %v1116 = vpack.c.b16 %v1004, %v1000
        %v1117 = vpack.c.b16 %v1005, %v1001
        %v1118 = vpack.c.b16 %v1010, %v1006
        %v1119 = vpack.c.b16 %v1011, %v1007
        %v1120 = vpack.c.b16 %v1012, %v1008
        %v1121 = vpack.c.b16 %v1013, %v1009
        %v1122 = vpack.c.b16 %v1018, %v1014
        %v1123 = vpack.c.b16 %v1019, %v1015
        %v1124 = vpack.c.b16 %v1020, %v1016
        %v1125 = vpack.c.b16 %v1021, %v1017
        %v1126 = vpack.c.b16 %v1026, %v1022
        %v1127 = vpack.c.b16 %v1027, %v1023
        %v1128 = vpack.c.b16 %v1028, %v1024
        %v1129 = vpack.c.b16 %v1029, %v1025
        %v1130 = vpack.c.b16 %v1034, %v1030
        %v1131 = vpack.c.b16 %v1035, %v1031
        %v1132 = vpack.c.b16 %v1036, %v1032
        %v1133 = vpack.c.b16 %v1037, %v1033
        %v1134 = vpack.c.b16 %v1042, %v1038
        %v1135 = vpack.c.b16 %v1043, %v1039
        %v1136 = vpack.c.b16 %v1044, %v1040
        %v1137 = vpack.c.b16 %v1045, %v1041
        %v1138 = vpack.c.b16 %v1050, %v1046
        %v1139 = vpack.c.b16 %v1051, %v1047
        %v1140 = vpack.c.b16 %v1052, %v1048
        %v1141 = vpack.c.b16 %v1053, %v1049
        %v1142 = vpack.c.b16 %v1058, %v1054
        %v1143 = vpack.c.b16 %v1059, %v1055
        %v1144 = vpack.c.b16 %v1060, %v1056
        %v1145 = vpack.c.b16 %v1061, %v1057
        %v1146 = vpack.c.b16 %v1066, %v1062
        %v1147 = vpack.c.b16 %v1067, %v1063
        %v1148 = vpack.c.b16 %v1068, %v1064
        %v1149 = vpack.c.b16 %v1069, %v1065
        %v1150 = vpack.c.b16 %v1074, %v1070
        %v1151 = vpack.c.b16 %v1075, %v1071
        %v1152 = vpack.c.b16 %v1076, %v1072
        %v1153 = vpack.c.b16 %v1077, %v1073
        %v1154 = vpack.c.b16 %v1082, %v1078
        %v1155 = vpack.c.b16 %v1083, %v1079
        %v1156 = vpack.c.b16 %v1084, %v1080
        %v1157 = vpack.c.b16 %v1085, %v1081
        %v1158 = vpack.c.b16 %v1090, %v1086
        %v1159 = vpack.c.b16 %v1091, %v1087
        %v1160 = vpack.c.b16 %v1092, %v1088
        %v1161 = vpack.c.b16 %v1093, %v1089
        %v1162 = vpack.c.b16 %v1098, %v1094
        %v1163 = vpack.c.b16 %v1099, %v1095
        %v1164 = vpack.c.b16 %v1100, %v1096
        %v1165 = vpack.c.b16 %v1101, %v1097
        %1230 = vmatprep.subr.bf16.mxu0 %v1131
        %1231 = vmatpush1.bf16.msra.mxu0 %v1130
        %1232 = vmatprep.subr.bf16.mxu0 %v1127
        %1233 = vmatpush1.bf16.msra.mxu0 %v1126
        %1234 = vmatprep.subr.bf16.mxu0 %v1123
        %1235 = vmatpush1.bf16.msra.mxu0 %v1122
        %1236 = vmatprep.subr.bf16.mxu0 %v1119
        %1237 = vmatpush1.bf16.msra.mxu0 %v1118
        %1238 = vmatprep.subr.bf16.mxu0 %v1115
        %1239 = vmatpush1.bf16.msra.mxu0 %v1114
        %1240 = vmatprep.subr.bf16.mxu0 %v1111
        %1241 = vmatpush1.bf16.msra.mxu0 %v1110
        %1242 = vmatprep.subr.bf16.mxu0 %v1107
        %1243 = vmatpush1.bf16.msra.mxu0 %v1106
        %1244 = vmatprep.subr.bf16.mxu0 %v1103
        %1245 = vmatpush1.bf16.msra.mxu0 %v1102
        %1246 = vmatprep.subr.bf16.mxu0 %v1163
        %1247 = vmatpush2.bf16.msra.mxu0 %v1162
        %1248 = vmatprep.subr.bf16.mxu0 %v1159
        %1249 = vmatpush2.bf16.msra.mxu0 %v1158
        %1250 = vmatprep.subr.bf16.mxu0 %v1155
        %1251 = vmatpush2.bf16.msra.mxu0 %v1154
        %1252 = vmatprep.subr.bf16.mxu0 %v1151
        %1253 = vmatpush2.bf16.msra.mxu0 %v1150
        %1254 = vmatprep.subr.bf16.mxu0 %v1147
        %1255 = vmatpush2.bf16.msra.mxu0 %v1146
        %1256 = vmatprep.subr.bf16.mxu0 %v1143
        %1257 = vmatpush2.bf16.msra.mxu0 %v1142
        %1258 = vmatprep.subr.bf16.mxu0 %v1139
        %1259 = vmatpush2.bf16.msra.mxu0 %v1138
        %1260 = vmatprep.subr.bf16.mxu0 %v1135
        %1261 = vmatpush2.bf16.msra.mxu0 %v1134
        %1262 = vmatprep.mubr.bf16.mxu0 %v823
        %1263 = vmatmul.mubr.bf16.gmra.mxu0 %v822
        %v1264 = vpop.f32.mrf.mxu0
        %v1265 = vadd.f32 %v893, %v1264
        %v1266 = vpop.f32.mrf.mxu0
        %v1267 = vadd.f32 %v897, %v1266
        %v1268 = vpop.f32.mrf.mxu0
        %v1269 = vpop.f32.mrf.mxu0
        %1270 = vdwg.mxu0
        %1271 = vmatprep.subr.bf16.mxu0 %v1133
        %1272 = vmatpush1.bf16.msra.mxu0 %v1132
        %1273 = vmatprep.subr.bf16.mxu0 %v1129
        %1274 = vmatpush1.bf16.msra.mxu0 %v1128
        %1275 = vmatprep.subr.bf16.mxu0 %v1125
        %1276 = vmatpush1.bf16.msra.mxu0 %v1124
        %1277 = vmatprep.subr.bf16.mxu0 %v1121
        %1278 = vmatpush1.bf16.msra.mxu0 %v1120
        %1279 = vmatprep.subr.bf16.mxu0 %v1117
        %1280 = vmatpush1.bf16.msra.mxu0 %v1116
        %1281 = vmatprep.subr.bf16.mxu0 %v1113
        %1282 = vmatpush1.bf16.msra.mxu0 %v1112
        %1283 = vmatprep.subr.bf16.mxu0 %v1109
        %1284 = vmatpush1.bf16.msra.mxu0 %v1108
        %1285 = vmatprep.subr.bf16.mxu0 %v1105
        %1286 = vmatpush1.bf16.msra.mxu0 %v1104
        %1287 = vmatprep.subr.bf16.mxu0 %v1165
        %1288 = vmatpush2.bf16.msra.mxu0 %v1164
        %1289 = vmatprep.subr.bf16.mxu0 %v1161
        %1290 = vmatpush2.bf16.msra.mxu0 %v1160
        %1291 = vmatprep.subr.bf16.mxu0 %v1157
        %1292 = vmatpush2.bf16.msra.mxu0 %v1156
        %1293 = vmatprep.subr.bf16.mxu0 %v1153
        %1294 = vmatpush2.bf16.msra.mxu0 %v1152
        %1295 = vmatprep.subr.bf16.mxu0 %v1149
        %1296 = vmatpush2.bf16.msra.mxu0 %v1148
        %1297 = vmatprep.subr.bf16.mxu0 %v1145
        %1298 = vmatpush2.bf16.msra.mxu0 %v1144
        %1299 = vmatprep.subr.bf16.mxu0 %v1141
        %1300 = vmatpush2.bf16.msra.mxu0 %v1140
        %1301 = vmatprep.subr.bf16.mxu0 %v1137
        %1302 = vmatpush2.bf16.msra.mxu0 %v1136
        %1303 = vmatprep.mubr.bf16.mxu0 %v823
        %1304 = vmatmul.mubr.bf16.gmra.mxu0 %v822
        %v1305 = vpop.f32.mrf.mxu0
        %v1306 = vadd.f32 %v901, %v1305
        %v1307 = vpop.f32.mrf.mxu0
        %v1308 = vadd.f32 %v905, %v1307
        %v1309 = vpop.f32.mrf.mxu0
        %v1310 = vpop.f32.mrf.mxu0
        %1311 = vdwg.mxu0
        %v1312 = vtanh.pop %v1265
        %v1313 = vtanh.pop %v1267
        %v1314 = vtanh.pop %v1306
        %v1315 = vtanh.pop %v1308
        %1316 = vst [vmem:[%s335] sm:$0xff] %v1312
        %1317 = vst [vmem:[%s335 + $0x8] sm:$0xff] %v1313
        %1318 = vst [vmem:[%s335 + $0x10] sm:$0xff] %v1314
        %1319 = vst [vmem:[%s335 + $0x18] sm:$0xff] %v1315
        %s1320 = sand.u32 %s167, 1
        %s1321 = scalar_lea.sflag [#allocation5], %s1320
        %s1322 = sand.u32 %s167, 1
        %s1323 = smul.addr %s1322, 32
        %s1324 = scalar_lea.vmem [#allocation12], %s1323
        // Predicated region
        $region69: #{tpu_custom_call.1} parent=43 // pred_check
          %p1325 = pneg %p177
        $region70: #{tpu_custom_call.1} parent=43 // pred_check_branch
          %1327 = sbr.rel (%p1325) target = $region72
        $region71: #{tpu_custom_call.1} parent=43 // pred_region
          %s1328 = smul.u32 4, %s23
          %s1330 = ssub.s32 512, 512
          %1331 = vsyncadd %s1321, %s1330
          %s1332 = smul.addr %s1328, 128
          %s1333 = scalar_lea.hbm %s6, %s1332
          %s1335 = sshll.u32 %s1324, 4
          %s1336 = int_to_ptr.vmem [resolvable:$true] %s1335
          %1338 = dma.vmem_to_hbm [thread:$0]  %s1336, 512, %s1333, %s1321
        $region72: #{tpu_custom_call.1} parent=43 // pred_fallthru
          _
      $region44: #{tpu_custom_call.1} parent=5 // pred_fallthru
        _
      %p1339 = scmp.le.s32.totalorder 2, %s18
      // Predicated region
      $region73: #{tpu_custom_call.1} parent=5 // pred_check
        %p1340 = pneg %p1339
      $region74: #{tpu_custom_call.1} parent=5 // pred_check_branch
        %1342 = sbr.rel (%p1340) target = $region76
      $region75: #{tpu_custom_call.1} parent=5 // pred_region
        %s1343 = ssub.s32 %s18, 2
        // Predicated region
        $region77: #{tpu_custom_call.1} parent=75 // pred_check
          %p1344 = pneg %p183
        $region78: #{tpu_custom_call.1} parent=75 // pred_check_branch
          %1346 = sbr.rel (%p1344) target = $region80
        $region79: #{tpu_custom_call.1} parent=75 // pred_region
          %s1347 = sand.u32 %s168, 1
          %s1348 = scalar_lea.sflag [#allocation5], %s1347
          %s1349 = sand.u32 %s168, 1
          %s1350 = smul.addr %s1349, 32
          %s1351 = scalar_lea.vmem [#allocation12], %s1350
          %1352 = dma.done %s1348, 512
        $region80: #{tpu_custom_call.1} parent=75 // pred_fallthru
          _
      $region76: #{tpu_custom_call.1} parent=5 // pred_fallthru
        _
    $region6: #{tpu_custom_call.1} parent=1 // loop_footer
      %s22 = sadd.s32 1, %s18
    $region7: #{tpu_custom_call.1} parent=1 // loop_footer_branch
      %17 = sbr.rel target = $region3
    $region8: #{tpu_custom_call.1} parent=1 // loop_exit
      _
    %1353 = vsyncpa [#allocation4], 1
    %s1354 = scalar_lea.sflag [#allocation4], 1
    %1355 = vsyncpa %s1354, 1
    %1356 = vsyncpa [#allocation7], 1
    %1357 = vsyncpa [#allocation10], 1
    %1358 = vsyncpa [#allocation5], 1
    %s1359 = scalar_lea.sflag [#allocation5], 1
    %1360 = vsyncpa %s1359, 1

</llo_original>
